<compile_context>
chip_gen: v5e
topology: v5e:2x2
jax: 0.10.0
libtpu: 0.0.40
codegen_flags: <defaults>
</compile_context>

<pallas_src>
import jax
import jax.numpy as jnp
from jax.experimental import pallas as pl
from jax.experimental.pallas import tpu as pltpu


def _sigmoid(z):
    # exp goes to the EUP slot; the divide is cheap on these small tensors.
    return 1.0 / (1.0 + jnp.exp(-z))


# ------------------------------ fused kernel --------------------------------

def _scse_kernel(x_ref, w1_ref, b1_ref, w2_ref, b2_ref, ws_ref, bs_ref, o_ref):
    # x_ref: (1, P, C)   one image, P = H*W rows, channels on the lane axis
    # w1_ref: (Cr, C)    cSE conv1 weight (torch layout (Cr, C, 1, 1) squeezed)
    # b1_ref: (Cr, 1)
    # w2_ref: (Cr, C)    cSE conv2 weight transposed (torch (C, Cr, 1, 1) -> (Cr, C))
    # b2_ref: (1, C)
    # ws_ref: (1, C)     sSE conv weight (torch (1, C, 1, 1) squeezed)
    # bs_ref: (1, 1)
    x = x_ref[0].astype(jnp.float32)                                  # (P, C)
    p_rows = x.shape[0]

    # ---- cSE branch: AdaptiveAvgPool2d(1) -> 1x1 conv -> ReLU -> 1x1 conv -> sigmoid
    m = jnp.sum(x, axis=0, keepdims=True) * (1.0 / p_rows)            # (1, C)
    h = jnp.sum(m * w1_ref[...], axis=-1, keepdims=True) + b1_ref[...]  # (Cr, 1)
    h = jnp.maximum(h, 0.0)                                           # ReLU
    c = jnp.sum(h * w2_ref[...], axis=0, keepdims=True) + b2_ref[...]   # (1, C)
    c = _sigmoid(c)

    # ---- sSE branch: 1x1 conv C -> 1 (lane reduction) -> sigmoid
    s = _sigmoid(jnp.sum(x * ws_ref[...], axis=-1, keepdims=True) + bs_ref[...])  # (P, 1)

    # ---- x * cSE(x) + x * sSE(x) == x * (cSE + sSE)
    o_ref[0] = (x * (c + s)).astype(o_ref.dtype)


def scse_apply(x_flat, params):
    """x_flat: (B, P, C) with P = H*W, channels last (lane axis)."""
    B, P, C = x_flat.shape
    Cr = params["w1t"].shape[0]
    # TODO(synk): for extremely large H*W (per-image block exceeding VMEM) this
    # would need a two-pass tiling (pooled-stats kernel, then apply kernel);
    # not needed at decoder-scale feature maps.
    return pl.pallas_call(
        _scse_kernel,
        out_shape=jax.ShapeDtypeStruct((B, P, C), x_flat.dtype),
        grid_spec=pltpu.PrefetchScalarGridSpec(
            num_scalar_prefetch=0, grid=(B,),
            in_specs=[pl.BlockSpec((1, P, C), lambda b: (b, 0, 0)),
                      pl.BlockSpec((Cr, C), lambda b: (0, 0)),
                      pl.BlockSpec((Cr, 1), lambda b: (0, 0)),
                      pl.BlockSpec((Cr, C), lambda b: (0, 0)),
                      pl.BlockSpec((1, C), lambda b: (0, 0)),
                      pl.BlockSpec((1, C), lambda b: (0, 0)),
                      pl.BlockSpec((1, 1), lambda b: (0, 0))],
            out_specs=pl.BlockSpec((1, P, C), lambda b: (b, 0, 0))),
        compiler_params=pltpu.CompilerParams(
            dimension_semantics=("parallel",)),
    )(x_flat, params["w1t"], params["b1"], params["w2t"], params["b2"],
      params["ws"], params["bs"])


def scse_forward(params, x_nchw):
    """Public wrapper: NCHW in, NCHW out (matches the PyTorch module)."""
    B, C, H, W = x_nchw.shape
    x = jnp.transpose(x_nchw, (0, 2, 3, 1)).reshape(B, H * W, C)   # channels -> lanes
    y = scse_apply(x, params)
    return jnp.transpose(y.reshape(B, H, W, C), (0, 3, 1, 2))


# --------------------------- parameters (synthetic) --------------------------

def init_params(key, in_channels, reduction=16):
    C = in_channels
    Cr = max(1, in_channels // reduction)
    k1, k2, k3, k4, k5, k6 = jax.random.split(key, 6)
    return {
        # cSE: Conv2d(C, Cr, 1)   torch weight (Cr, C, 1, 1) -> (Cr, C)
        "w1t": (2.0 / C) ** 0.5 * jax.random.normal(k1, (Cr, C), jnp.float32),
        "b1": 0.01 * jax.random.normal(k2, (Cr, 1), jnp.float32),
        # cSE: Conv2d(Cr, C, 1)   torch weight (C, Cr, 1, 1) -> transposed (Cr, C)
        "w2t": (2.0 / Cr) ** 0.5 * jax.random.normal(k3, (Cr, C), jnp.float32),
        "b2": 0.01 * jax.random.normal(k4, (1, C), jnp.float32),
        # sSE: Conv2d(C, 1, 1)    torch weight (1, C, 1, 1) -> (1, C)
        "ws": (1.0 / C) ** 0.5 * jax.random.normal(k5, (1, C), jnp.float32),
        "bs": 0.01 * jax.random.normal(k6, (1, 1), jnp.float32),
    }


# ------------------------------ pure-JAX reference ---------------------------

def scse_reference(params, x_nchw):
    x = x_nchw.astype(jnp.float32)
    m = jnp.mean(x, axis=(2, 3))                                              # (B, C)
    h = jnp.maximum(m @ params["w1t"].T + params["b1"][:, 0], 0.0)            # (B, Cr)
    c = jax.nn.sigmoid(h @ params["w2t"] + params["b2"][0])                   # (B, C)
    s = jax.nn.sigmoid(jnp.einsum("bchw,c->bhw", x, params["ws"][0])
                       + params["bs"][0, 0])                                  # (B, H, W)
    return x * c[:, :, None, None] + x * s[:, None, :, :]


# ----------------------------------- main ------------------------------------

if __name__ == "__main__":
    key = jax.random.PRNGKey(0)
    pkey, xkey = jax.random.split(key)

    B, C, H, W = 2, 128, 16, 16          # C=128 -> lane-dense; reduction=16 -> Cr=8
    params = init_params(pkey, in_channels=C, reduction=16)
    x = jax.random.normal(xkey, (B, C, H, W), jnp.float32)

    out = jax.block_until_ready(scse_forward(params, x))
    assert out.shape == (B, C, H, W), out.shape
    assert bool(jnp.isfinite(out).all())

    ref = scse_reference(params, x)
    max_err = float(jnp.max(jnp.abs(out - ref)))
    assert max_err < 1e-4, f"mismatch vs reference: {max_err}"

    print("KERNEL_OK")
</pallas_src>

<mosaic_0001>
module attributes {stable_mosaic.version = 11 : i64} {
  func.func @_scse_kernel(%arg0: i32, %arg1: memref<1x256x128xf32, #tpu.memory_space<vmem>>, %arg2: memref<8x128xf32, #tpu.memory_space<vmem>>, %arg3: memref<8x1xf32, #tpu.memory_space<vmem>>, %arg4: memref<8x128xf32, #tpu.memory_space<vmem>>, %arg5: memref<1x128xf32, #tpu.memory_space<vmem>>, %arg6: memref<1x128xf32, #tpu.memory_space<vmem>>, %arg7: memref<1x1xf32, #tpu.memory_space<vmem>>, %arg8: memref<1x256x128xf32, #tpu.memory_space<vmem>>) attributes {dimension_semantics = [#tpu.dimension_semantics<parallel>], iteration_bounds = array<i64: 2>, scalar_prefetch = 0 : i64, scratch_operands = 0 : i64, tpu.core_type = #tpu.core_type<tc>, window_params = [{transform_indices = @transform_0, window_bounds = array<i64: 1, 256, 128>}, {pipeline_mode = #tpu.pipeline_mode<synchronous>, transform_indices = @transform_1, window_bounds = array<i64: 8, 128>}, {pipeline_mode = #tpu.pipeline_mode<synchronous>, transform_indices = @transform_2, window_bounds = array<i64: 8, 1>}, {pipeline_mode = #tpu.pipeline_mode<synchronous>, transform_indices = @transform_3, window_bounds = array<i64: 8, 128>}, {pipeline_mode = #tpu.pipeline_mode<synchronous>, transform_indices = @transform_4, window_bounds = array<i64: 1, 128>}, {pipeline_mode = #tpu.pipeline_mode<synchronous>, transform_indices = @transform_5, window_bounds = array<i64: 1, 128>}, {pipeline_mode = #tpu.pipeline_mode<synchronous>, transform_indices = @transform_6, window_bounds = array<i64: 1, 1>}, {transform_indices = @transform_7, window_bounds = array<i64: 1, 256, 128>}]} {
    %c0 = arith.constant 0 : index
    %c0_0 = arith.constant 0 : index
    %c0_1 = arith.constant 0 : index
    %0 = vector.load %arg1[%c0, %c0_0, %c0_1] : memref<1x256x128xf32, #tpu.memory_space<vmem>>, vector<1x256x128xf32>
    %1 = vector.shape_cast %0 : vector<1x256x128xf32> to vector<256x128xf32>
    %cst = arith.constant dense<0.000000e+00> : vector<128xf32>
    %2 = vector.multi_reduction <add>, %1, %cst [0] : vector<256x128xf32> to vector<128xf32>
    %3 = vector.shape_cast %2 : vector<128xf32> to vector<1x128xf32>
    %cst_2 = arith.constant 3.906250e-03 : f32
    %4 = vector.broadcast %cst_2 : f32 to vector<1x128xf32>
    %5 = arith.mulf %3, %4 : vector<1x128xf32>
    %c0_3 = arith.constant 0 : index
    %c0_4 = arith.constant 0 : index
    %6 = vector.load %arg2[%c0_3, %c0_4] : memref<8x128xf32, #tpu.memory_space<vmem>>, vector<8x128xf32>
    %7 = vector.broadcast %5 : vector<1x128xf32> to vector<8x128xf32>
    %8 = arith.mulf %7, %6 : vector<8x128xf32>
    %cst_5 = arith.constant dense<0.000000e+00> : vector<8xf32>
    %9 = vector.multi_reduction <add>, %8, %cst_5 [1] : vector<8x128xf32> to vector<8xf32>
    %10 = vector.shape_cast %9 : vector<8xf32> to vector<8x1xf32>
    %c0_6 = arith.constant 0 : index
    %c0_7 = arith.constant 0 : index
    %11 = vector.load %arg3[%c0_6, %c0_7] : memref<8x1xf32, #tpu.memory_space<vmem>>, vector<8x1xf32>
    %12 = arith.addf %10, %11 : vector<8x1xf32>
    %cst_8 = arith.constant 0.000000e+00 : f32
    %13 = vector.broadcast %cst_8 : f32 to vector<8x1xf32>
    %14 = arith.maximumf %12, %13 : vector<8x1xf32>
    %c0_9 = arith.constant 0 : index
    %c0_10 = arith.constant 0 : index
    %15 = vector.load %arg4[%c0_9, %c0_10] : memref<8x128xf32, #tpu.memory_space<vmem>>, vector<8x128xf32>
    %16 = vector.broadcast %14 : vector<8x1xf32> to vector<8x128xf32>
    %17 = arith.mulf %16, %15 : vector<8x128xf32>
    %cst_11 = arith.constant dense<0.000000e+00> : vector<128xf32>
    %18 = vector.multi_reduction <add>, %17, %cst_11 [0] : vector<8x128xf32> to vector<128xf32>
    %19 = vector.shape_cast %18 : vector<128xf32> to vector<1x128xf32>
    %c0_12 = arith.constant 0 : index
    %c0_13 = arith.constant 0 : index
    %20 = vector.load %arg5[%c0_12, %c0_13] : memref<1x128xf32, #tpu.memory_space<vmem>>, vector<1x128xf32>
    %21 = arith.addf %19, %20 : vector<1x128xf32>
    %cst_14 = arith.constant 0.000000e+00 : f32
    %22 = vector.broadcast %cst_14 : f32 to vector<1x128xf32>
    %23 = arith.subf %22, %21 : vector<1x128xf32>
    %24 = math.exp %23 : vector<1x128xf32>
    %cst_15 = arith.constant 1.000000e+00 : f32
    %25 = vector.broadcast %cst_15 : f32 to vector<1x128xf32>
    %26 = arith.addf %25, %24 : vector<1x128xf32>
    %cst_16 = arith.constant 1.000000e+00 : f32
    %27 = vector.broadcast %cst_16 : f32 to vector<1x128xf32>
    %28 = arith.divf %27, %26 : vector<1x128xf32>
    %c0_17 = arith.constant 0 : index
    %c0_18 = arith.constant 0 : index
    %29 = vector.load %arg6[%c0_17, %c0_18] : memref<1x128xf32, #tpu.memory_space<vmem>>, vector<1x128xf32>
    %30 = vector.broadcast %29 : vector<1x128xf32> to vector<256x128xf32>
    %31 = arith.mulf %1, %30 : vector<256x128xf32>
    %cst_19 = arith.constant dense<0.000000e+00> : vector<256xf32>
    %32 = vector.multi_reduction <add>, %31, %cst_19 [1] : vector<256x128xf32> to vector<256xf32>
    %33 = vector.shape_cast %32 : vector<256xf32> to vector<256x1xf32>
    %c0_20 = arith.constant 0 : index
    %c0_21 = arith.constant 0 : index
    %34 = vector.load %arg7[%c0_20, %c0_21] : memref<1x1xf32, #tpu.memory_space<vmem>>, vector<1x1xf32>
    %35 = vector.broadcast %34 : vector<1x1xf32> to vector<256x1xf32>
    %36 = arith.addf %33, %35 : vector<256x1xf32>
    %cst_22 = arith.constant 0.000000e+00 : f32
    %37 = vector.broadcast %cst_22 : f32 to vector<256x1xf32>
    %38 = arith.subf %37, %36 : vector<256x1xf32>
    %39 = math.exp %38 : vector<256x1xf32>
    %cst_23 = arith.constant 1.000000e+00 : f32
    %40 = vector.broadcast %cst_23 : f32 to vector<256x1xf32>
    %41 = arith.addf %40, %39 : vector<256x1xf32>
    %cst_24 = arith.constant 1.000000e+00 : f32
    %42 = vector.broadcast %cst_24 : f32 to vector<256x1xf32>
    %43 = arith.divf %42, %41 : vector<256x1xf32>
    %44 = vector.broadcast %28 : vector<1x128xf32> to vector<256x128xf32>
    %45 = vector.broadcast %43 : vector<256x1xf32> to vector<256x128xf32>
    %46 = arith.addf %44, %45 : vector<256x128xf32>
    %47 = arith.mulf %1, %46 : vector<256x128xf32>
    %c0_25 = arith.constant 0 : index
    %c0_26 = arith.constant 0 : index
    %c0_27 = arith.constant 0 : index
    %48 = vector.load %arg8[%c0_25, %c0_26, %c0_27] : memref<1x256x128xf32, #tpu.memory_space<vmem>>, vector<1x256x128xf32>
    %49 = vector.shape_cast %48 : vector<1x256x128xf32> to vector<256x128xf32>
    %50 = vector.shape_cast %47 : vector<256x128xf32> to vector<1x256x128xf32>
    tpu.vector_store %arg8[%c0_25, %c0_26, %c0_27], %50 {strides = array<i32>} : memref<1x256x128xf32, #tpu.memory_space<vmem>>, vector<1x256x128xf32>,
    return
  }
  func.func @transform_0(%arg0: i32) -> (i32, i32, i32) {
    %c0_i32 = arith.constant 0 : i32
    %c0_i32_0 = arith.constant 0 : i32
    %c0_i32_1 = arith.constant 0 : i32
    return %arg0, %c0_i32, %c0_i32_0 : i32, i32, i32
  }
  func.func @transform_1(%arg0: i32) -> (i32, i32) {
    %c0_i32 = arith.constant 0 : i32
    %c0_i32_0 = arith.constant 0 : i32
    %c0_i32_1 = arith.constant 0 : i32
    return %c0_i32, %c0_i32_0 : i32, i32
  }
  func.func @transform_2(%arg0: i32) -> (i32, i32) {
    %c0_i32 = arith.constant 0 : i32
    %c0_i32_0 = arith.constant 0 : i32
    %c0_i32_1 = arith.constant 0 : i32
    return %c0_i32, %c0_i32_0 : i32, i32
  }
  func.func @transform_3(%arg0: i32) -> (i32, i32) {
    %c0_i32 = arith.constant 0 : i32
    %c0_i32_0 = arith.constant 0 : i32
    %c0_i32_1 = arith.constant 0 : i32
    return %c0_i32, %c0_i32_0 : i32, i32
  }
  func.func @transform_4(%arg0: i32) -> (i32, i32) {
    %c0_i32 = arith.constant 0 : i32
    %c0_i32_0 = arith.constant 0 : i32
    %c0_i32_1 = arith.constant 0 : i32
    return %c0_i32, %c0_i32_0 : i32, i32
  }
  func.func @transform_5(%arg0: i32) -> (i32, i32) {
    %c0_i32 = arith.constant 0 : i32
    %c0_i32_0 = arith.constant 0 : i32
    %c0_i32_1 = arith.constant 0 : i32
    return %c0_i32, %c0_i32_0 : i32, i32
  }
  func.func @transform_6(%arg0: i32) -> (i32, i32) {
    %c0_i32 = arith.constant 0 : i32
    %c0_i32_0 = arith.constant 0 : i32
    %c0_i32_1 = arith.constant 0 : i32
    return %c0_i32, %c0_i32_0 : i32, i32
  }
  func.func @transform_7(%arg0: i32) -> (i32, i32, i32) {
    %c0_i32 = arith.constant 0 : i32
    %c0_i32_0 = arith.constant 0 : i32
    %c0_i32_1 = arith.constant 0 : i32
    return %arg0, %c0_i32, %c0_i32_0 : i32, i32, i32
  }
}

</mosaic_0001>

<llo_original>
// kernel: tpu_custom_call.1
$region0: #{tpu_custom_call.1}
  #allocation0 [shape = 'u32[]', space=smem, size = 0x4, offset = 0x4, fixed_abs, tag = 'smem constant byte address 0x4 - core index']
  #allocation1 [shape = 'u32[72,128]{1,0:T(1,128)}', space=vmem, size = 0x9000, scoped, tag = 'internal scratch']
  #allocation2 [shape = 'f32[1,1]{1,0:T(1,128)S(1)}', space=vmem, size = 0x200, scoped, tag = 'scoped memory for tpu_custom_call.1']
  %s0 = inlined_call_operand.hbm [shape: f32[2,256,128], index: 0, kind: input, shape index: {}]
  %s1 = inlined_call_operand.vmem [shape: f32[8,128], index: 1, kind: input, shape index: {}]
  %s2 = inlined_call_operand.vmem [shape: f32[8,1], index: 2, kind: input, shape index: {}]
  %s3 = inlined_call_operand.hbm [shape: f32[8,128], index: 3, kind: input, shape index: {}]
  %s4 = inlined_call_operand.vmem [shape: f32[1,128], index: 4, kind: input, shape index: {}]
  %s5 = inlined_call_operand.vmem [shape: f32[1,128], index: 5, kind: input, shape index: {}]
  %s6 = inlined_call_operand.<no memory space> [shape: f32[1,1], index: 6, kind: input, shape index: {}]
  %s7 = inlined_call_operand.hbm [shape: f32[2,256,128], index: 7, kind: output, shape index: {}]
  %s8 = sld [smem:[#allocation0]]
  $region69: #{tpu_custom_call.1} parent=0
    _
  %s10 = ssub.s32 1, %s8
  %s11 = scalar_select 0, %s10, %s8
  %v12 = vstv %s6
  %13 = vst [vmem:[#allocation2] sm:$0x1] %v12
  $region1: #{tpu_custom_call.1} parent=0
    #allocation3 [shape = 'u8[262144]{0}', space=vmem, size = 0x40000, scoped, tag = 'input window, operand 0']
    #allocation4 [shape = 's32[2]{0}', space=sflag, size = 0x8, scoped, tag = 'scoped memory for tpu_custom_call.1']
    #allocation5 [shape = 's32[2]{0}', space=sflag, size = 0x8, scoped, tag = 'scoped memory for tpu_custom_call.1']
    #allocation6 [shape = 'u8[4096]{0}', space=vmem, size = 0x1000, scoped, tag = 'input window, operand 3, single buffered']
    #allocation7 [shape = 's32[1]{0}', space=sflag, size = 0x4, scoped, tag = 'scoped memory for tpu_custom_call.1']
    #allocation8 [shape = 'u8[262144]{0}', space=vmem, size = 0x40000, scoped, tag = 'output window, operand 0']
    %14 = vsyncpa [#allocation4], 0
    %s15 = scalar_lea.sflag [#allocation4], 1
    %16 = vsyncpa %s15, 0
    %17 = vsyncpa [#allocation7], 0
    %18 = vsyncpa [#allocation5], 0
    %s19 = scalar_lea.sflag [#allocation5], 1
    %20 = vsyncpa %s19, 0
    loop: start=0, step=1, limit=4
    $region2: #{tpu_custom_call.1} parent=1 // loop_pre_header
      _
    $region3: #{tpu_custom_call.1} parent=1 // loop_header
      %s22 = sphi 0, %s26
      %p23 = scmp.ge.s32.totalorder %s22, 4
      %s32 = sphi 0, %s34
      %s35 = sphi 0, %s32
      %s36 = sphi 0, %s35
      %s52 = sphi 0, %s36
      %s56 = sphi 0, %s56
      %s58 = sphi 0, %s56
      %s59 = sphi 0, %s58
      %s73 = sphi 0, %s59
      %s77 = sphi 0, %s77
      %s79 = sphi 0, %s77
      %s80 = sphi 0, %s79
      %s94 = sphi 0, %s80
      %s98 = sphi 0, %s98
      %s100 = sphi 0, %s98
      %s101 = sphi 0, %s100
      %s115 = sphi 0, %s101
      %s119 = sphi 0, %s119
      %s121 = sphi 0, %s119
      %s122 = sphi 0, %s121
      %s136 = sphi 0, %s122
      %s140 = sphi 0, %s140
      %s142 = sphi 0, %s140
      %s143 = sphi 0, %s142
      %s157 = sphi 0, %s143
      %s161 = sphi 0, %s161
      %s163 = sphi 0, %s161
      %s164 = sphi 0, %s163
      %s178 = sphi 0, %s164
      %s184 = sphi 0, %s186
      %s187 = sphi 0, %s184
      %s188 = sphi 0, %s187
      %s204 = sphi 0, %s188
    $region4: #{tpu_custom_call.1} parent=1 // loop_header_branch
      %25 = sbr.rel (%p23) target = $region8
    $region5: #{tpu_custom_call.1} parent=1 // loop_body
      %s27 = ssub.s32 %s22, 1
      %s28 = ssub.s32 %s22, 2
      %s29 = sadd.s32 %s22, 1
      %s30 = ssub.s32 %s22, %s29
      %p31 = scmp.eq.s32.totalorder %s30, 0
      %s33 = sadd.s32 %s32, 1
      %s34 = scalar_select %p31, %s32, %s33
      %p37 = pneg %p31
      %p38 = scmp.eq.s32.totalorder %s22, 1
      %p39 = por %p37, %p38
      %p40 = scmp.ne.s32.totalorder %s32, %s35
      %p41 = scmp.eq.s32.totalorder %s22, 0
      %p42 = por %p40, %p41
      %p43 = scmp.ne.s32.totalorder %s32, %s35
      %p44 = scmp.eq.s32.totalorder %s27, 1
      %p45 = por %p43, %p44
      %p46 = scmp.ne.s32.totalorder %s35, %s36
      %p47 = scmp.eq.s32.totalorder %s27, 0
      %p48 = por %p46, %p47
      %p49 = scmp.ne.s32.totalorder %s35, %s36
      %p50 = scmp.eq.s32.totalorder %s28, 1
      %p51 = por %p49, %p50
      %p53 = scmp.ne.s32.totalorder %s36, %s52
      %p54 = scmp.eq.s32.totalorder %s28, 0
      %p55 = por %p53, %p54
      %s57 = sadd.s32 %s56, 1
      %p60 = scmp.eq.s32.totalorder %s22, 1
      %p61 = scmp.ne.s32.totalorder %s56, %s58
      %p62 = scmp.eq.s32.totalorder %s22, 0
      %p63 = por %p61, %p62
      %p64 = scmp.ne.s32.totalorder %s56, %s58
      %p65 = scmp.eq.s32.totalorder %s27, 1
      %p66 = por %p64, %p65
      %p67 = scmp.ne.s32.totalorder %s58, %s59
      %p68 = scmp.eq.s32.totalorder %s27, 0
      %p69 = por %p67, %p68
      %p70 = scmp.ne.s32.totalorder %s58, %s59
      %p71 = scmp.eq.s32.totalorder %s28, 1
      %p72 = por %p70, %p71
      %p74 = scmp.ne.s32.totalorder %s59, %s73
      %p75 = scmp.eq.s32.totalorder %s28, 0
      %p76 = por %p74, %p75
      %s78 = sadd.s32 %s77, 1
      %p81 = scmp.eq.s32.totalorder %s22, 1
      %p82 = scmp.ne.s32.totalorder %s77, %s79
      %p83 = scmp.eq.s32.totalorder %s22, 0
      %p84 = por %p82, %p83
      %p85 = scmp.ne.s32.totalorder %s77, %s79
      %p86 = scmp.eq.s32.totalorder %s27, 1
      %p87 = por %p85, %p86
      %p88 = scmp.ne.s32.totalorder %s79, %s80
      %p89 = scmp.eq.s32.totalorder %s27, 0
      %p90 = por %p88, %p89
      %p91 = scmp.ne.s32.totalorder %s79, %s80
      %p92 = scmp.eq.s32.totalorder %s28, 1
      %p93 = por %p91, %p92
      %p95 = scmp.ne.s32.totalorder %s80, %s94
      %p96 = scmp.eq.s32.totalorder %s28, 0
      %p97 = por %p95, %p96
      %s99 = sadd.s32 %s98, 1
      %p102 = scmp.eq.s32.totalorder %s22, 1
      %p103 = scmp.ne.s32.totalorder %s98, %s100
      %p104 = scmp.eq.s32.totalorder %s22, 0
      %p105 = por %p103, %p104
      %p106 = scmp.ne.s32.totalorder %s98, %s100
      %p107 = scmp.eq.s32.totalorder %s27, 1
      %p108 = por %p106, %p107
      %p109 = scmp.ne.s32.totalorder %s100, %s101
      %p110 = scmp.eq.s32.totalorder %s27, 0
      %p111 = por %p109, %p110
      %p112 = scmp.ne.s32.totalorder %s100, %s101
      %p113 = scmp.eq.s32.totalorder %s28, 1
      %p114 = por %p112, %p113
      %p116 = scmp.ne.s32.totalorder %s101, %s115
      %p117 = scmp.eq.s32.totalorder %s28, 0
      %p118 = por %p116, %p117
      %s120 = sadd.s32 %s119, 1
      %p123 = scmp.eq.s32.totalorder %s22, 1
      %p124 = scmp.ne.s32.totalorder %s119, %s121
      %p125 = scmp.eq.s32.totalorder %s22, 0
      %p126 = por %p124, %p125
      %p127 = scmp.ne.s32.totalorder %s119, %s121
      %p128 = scmp.eq.s32.totalorder %s27, 1
      %p129 = por %p127, %p128
      %p130 = scmp.ne.s32.totalorder %s121, %s122
      %p131 = scmp.eq.s32.totalorder %s27, 0
      %p132 = por %p130, %p131
      %p133 = scmp.ne.s32.totalorder %s121, %s122
      %p134 = scmp.eq.s32.totalorder %s28, 1
      %p135 = por %p133, %p134
      %p137 = scmp.ne.s32.totalorder %s122, %s136
      %p138 = scmp.eq.s32.totalorder %s28, 0
      %p139 = por %p137, %p138
      %s141 = sadd.s32 %s140, 1
      %p144 = scmp.eq.s32.totalorder %s22, 1
      %p145 = scmp.ne.s32.totalorder %s140, %s142
      %p146 = scmp.eq.s32.totalorder %s22, 0
      %p147 = por %p145, %p146
      %p148 = scmp.ne.s32.totalorder %s140, %s142
      %p149 = scmp.eq.s32.totalorder %s27, 1
      %p150 = por %p148, %p149
      %p151 = scmp.ne.s32.totalorder %s142, %s143
      %p152 = scmp.eq.s32.totalorder %s27, 0
      %p153 = por %p151, %p152
      %p154 = scmp.ne.s32.totalorder %s142, %s143
      %p155 = scmp.eq.s32.totalorder %s28, 1
      %p156 = por %p154, %p155
      %p158 = scmp.ne.s32.totalorder %s143, %s157
      %p159 = scmp.eq.s32.totalorder %s28, 0
      %p160 = por %p158, %p159
      %s162 = sadd.s32 %s161, 1
      %p165 = scmp.eq.s32.totalorder %s22, 1
      %p166 = scmp.ne.s32.totalorder %s161, %s163
      %p167 = scmp.eq.s32.totalorder %s22, 0
      %p168 = por %p166, %p167
      %p169 = scmp.ne.s32.totalorder %s161, %s163
      %p170 = scmp.eq.s32.totalorder %s27, 1
      %p171 = por %p169, %p170
      %p172 = scmp.ne.s32.totalorder %s163, %s164
      %p173 = scmp.eq.s32.totalorder %s27, 0
      %p174 = por %p172, %p173
      %p175 = scmp.ne.s32.totalorder %s163, %s164
      %p176 = scmp.eq.s32.totalorder %s28, 1
      %p177 = por %p175, %p176
      %p179 = scmp.ne.s32.totalorder %s164, %s178
      %p180 = scmp.eq.s32.totalorder %s28, 0
      %p181 = por %p179, %p180
      %s182 = ssub.s32 %s22, %s29
      %p183 = scmp.eq.s32.totalorder %s182, 0
      %s185 = sadd.s32 %s184, 1
      %s186 = scalar_select %p183, %s184, %s185
      %p189 = pneg %p183
      %p190 = scmp.eq.s32.totalorder %s22, 1
      %p191 = por %p189, %p190
      %p192 = scmp.ne.s32.totalorder %s184, %s187
      %p193 = scmp.eq.s32.totalorder %s22, 0
      %p194 = por %p192, %p193
      %p195 = scmp.ne.s32.totalorder %s184, %s187
      %p196 = scmp.eq.s32.totalorder %s27, 1
      %p197 = por %p195, %p196
      %p198 = scmp.ne.s32.totalorder %s187, %s188
      %p199 = scmp.eq.s32.totalorder %s27, 0
      %p200 = por %p198, %p199
      %p201 = scmp.ne.s32.totalorder %s187, %s188
      %p202 = scmp.eq.s32.totalorder %s28, 1
      %p203 = por %p201, %p202
      %p205 = scmp.ne.s32.totalorder %s188, %s204
      %p206 = scmp.eq.s32.totalorder %s28, 0
      %p207 = por %p205, %p206
      %p208 = scmp.le.s32.totalorder 1, %s22
      %p209 = scmp.lt.s32.totalorder %s22, 3
      %p210 = pnand %p208, %p209
      %p211 = pneg %p210
      // Predicated region
      $region9: #{tpu_custom_call.1} parent=5 // pred_check
        _
      $region10: #{tpu_custom_call.1} parent=5 // pred_check_branch
        %213 = sbr.rel (%p210) target = $region12
      $region11: #{tpu_custom_call.1} parent=5 // pred_region
        %s214 = ssub.s32 %s22, 1
        // Predicated region
        $region13: #{tpu_custom_call.1} parent=11 // pred_check
          %p215 = pneg %p69
        $region14: #{tpu_custom_call.1} parent=11 // pred_check_branch
          %217 = sbr.rel (%p215) target = $region16
        $region15: #{tpu_custom_call.1} parent=11 // pred_region
          _
        $region16: #{tpu_custom_call.1} parent=11 // pred_fallthru
          _
        // Predicated region
        $region17: #{tpu_custom_call.1} parent=11 // pred_check
          %p218 = pneg %p90
        $region18: #{tpu_custom_call.1} parent=11 // pred_check_branch
          %220 = sbr.rel (%p218) target = $region20
        $region19: #{tpu_custom_call.1} parent=11 // pred_region
          _
        $region20: #{tpu_custom_call.1} parent=11 // pred_fallthru
          _
        // Predicated region
        $region21: #{tpu_custom_call.1} parent=11 // pred_check
          %p221 = pneg %p111
        $region22: #{tpu_custom_call.1} parent=11 // pred_check_branch
          %223 = sbr.rel (%p221) target = $region24
        $region23: #{tpu_custom_call.1} parent=11 // pred_region
          %225 = vsyncadd [#allocation7], 0
          %s227 = sshll.u32 %s3, 4
          %s228 = int_to_ptr.hbm [resolvable:$true] %s227
          %s229 = sshll.u32 [#allocation6], 4
          %s230 = int_to_ptr.vmem [resolvable:$true] %s229
          %232 = dma.hbm_to_vmem [thread:$0]  %s228, 128, %s230, [#allocation7]
        $region24: #{tpu_custom_call.1} parent=11 // pred_fallthru
          _
        // Predicated region
        $region25: #{tpu_custom_call.1} parent=11 // pred_check
          %p233 = pneg %p132
        $region26: #{tpu_custom_call.1} parent=11 // pred_check_branch
          %235 = sbr.rel (%p233) target = $region28
        $region27: #{tpu_custom_call.1} parent=11 // pred_region
          _
        $region28: #{tpu_custom_call.1} parent=11 // pred_fallthru
          _
        // Predicated region
        $region29: #{tpu_custom_call.1} parent=11 // pred_check
          %p236 = pneg %p153
        $region30: #{tpu_custom_call.1} parent=11 // pred_check_branch
          %238 = sbr.rel (%p236) target = $region32
        $region31: #{tpu_custom_call.1} parent=11 // pred_region
          _
        $region32: #{tpu_custom_call.1} parent=11 // pred_fallthru
          _
        // Predicated region
        $region33: #{tpu_custom_call.1} parent=11 // pred_check
          %p239 = pneg %p174
        $region34: #{tpu_custom_call.1} parent=11 // pred_check_branch
          %241 = sbr.rel (%p239) target = $region36
        $region35: #{tpu_custom_call.1} parent=11 // pred_region
          _
        $region36: #{tpu_custom_call.1} parent=11 // pred_fallthru
          _
      $region12: #{tpu_custom_call.1} parent=5 // pred_fallthru
        _
      %p242 = scmp.lt.s32.totalorder %s22, 2
      // Predicated region
      $region37: #{tpu_custom_call.1} parent=5 // pred_check
        %p243 = pneg %p242
      $region38: #{tpu_custom_call.1} parent=5 // pred_check_branch
        %245 = sbr.rel (%p243) target = $region40
      $region39: #{tpu_custom_call.1} parent=5 // pred_region
        // Predicated region
        $region41: #{tpu_custom_call.1} parent=39 // pred_check
          %p246 = pneg %p42
        $region42: #{tpu_custom_call.1} parent=39 // pred_check_branch
          %248 = sbr.rel (%p246) target = $region44
        $region43: #{tpu_custom_call.1} parent=39 // pred_region
          %s249 = sand.u32 %s32, 1
          %s250 = scalar_lea.sflag [#allocation4], %s249
          %s251 = sand.u32 %s32, 1
          %s252 = smul.addr %s251, 256
          %s253 = scalar_lea.vmem [#allocation3], %s252
          %255 = vsyncadd %s250, 0
          %s256 = smul.addr %s22, 32
          %s257 = smul.addr %s256, 8
          %s258 = scalar_lea.hbm %s0, %s257
          %s259 = sshll.u32 %s258, 4
          %s260 = int_to_ptr.hbm [resolvable:$true] %s259
          %s261 = sshll.u32 %s253, 4
          %s262 = int_to_ptr.vmem [resolvable:$true] %s261
          %267 = dma.hbm_to_vmem [thread:$0]  %s260, 4096, %s262, %s250, 128, 128, 8
        $region44: #{tpu_custom_call.1} parent=39 // pred_fallthru
          _
      $region40: #{tpu_custom_call.1} parent=5 // pred_fallthru
        _
      %p268 = scmp.le.s32.totalorder 1, %s22
      %p269 = scmp.lt.s32.totalorder %s22, 3
      %p270 = pnand %p268, %p269
      %p271 = pneg %p270
      // Predicated region
      $region45: #{tpu_custom_call.1} parent=5 // pred_check
        _
      $region46: #{tpu_custom_call.1} parent=5 // pred_check_branch
        %273 = sbr.rel (%p270) target = $region48
      $region47: #{tpu_custom_call.1} parent=5 // pred_region
        %s274 = ssub.s32 %s22, 1
        %s275 = sand.u32 %s35, 1
        %s276 = scalar_lea.sflag [#allocation4], %s275
        %s277 = sand.u32 %s35, 1
        %s278 = smul.addr %s277, 256
        %s279 = scalar_lea.vmem [#allocation3], %s278
        // Predicated region
        $region49: #{tpu_custom_call.1} parent=47 // pred_check
          %p280 = pneg %p48
        $region50: #{tpu_custom_call.1} parent=47 // pred_check_branch
          %282 = sbr.rel (%p280) target = $region52
        $region51: #{tpu_custom_call.1} parent=47 // pred_region
          %284 = dma.done %s276, 4096
        $region52: #{tpu_custom_call.1} parent=47 // pred_fallthru
          _
        // Predicated region
        $region53: #{tpu_custom_call.1} parent=47 // pred_check
          %p285 = pneg %p111
        $region54: #{tpu_custom_call.1} parent=47 // pred_check_branch
          %287 = sbr.rel (%p285) target = $region56
        $region55: #{tpu_custom_call.1} parent=47 // pred_region
          %289 = dma.done [#allocation7], 128
        $region56: #{tpu_custom_call.1} parent=47 // pred_fallthru
          _
        %s290 = sand.u32 %s35, 1
        %s291 = scalar_lea.sflag [#allocation4], %s290
        %s292 = sand.u32 %s35, 1
        %s293 = smul.addr %s292, 256
        %s294 = scalar_lea.vmem [#allocation3], %s293
        %p295 = pneg %p48
        %p296 = pneg %p45
        %p297 = pneg %p69
        %p298 = pneg %p66
        %p299 = pneg %p90
        %p300 = pneg %p87
        %p301 = pneg %p111
        %p302 = pneg %p108
        %p303 = pneg %p132
        %p304 = pneg %p129
        %p305 = pneg %p153
        %p306 = pneg %p150
        %p307 = pneg %p174
        %p308 = pneg %p171
        %p309 = pneg %p200
        %p310 = pneg %p197
        %s311 = sand.u32 %s187, 1
        %s312 = scalar_lea.sflag [#allocation5], %s311
        %s313 = sand.u32 %s187, 1
        %s314 = smul.addr %s313, 256
        %s315 = scalar_lea.vmem [#allocation8], %s314
        %v316 = vld [vmem:[%s279] sm:$0xff]
        %v317 = vld [vmem:[%s279 + $0x8] sm:$0xff]
        %v318 = vld [vmem:[%s279 + $0x10] sm:$0xff]
        %v319 = vld [vmem:[%s279 + $0x18] sm:$0xff]
        %v320 = vld [vmem:[%s279 + $0x20] sm:$0xff]
        %v321 = vld [vmem:[%s279 + $0x28] sm:$0xff]
        %v322 = vld [vmem:[%s279 + $0x30] sm:$0xff]
        %v323 = vld [vmem:[%s279 + $0x38] sm:$0xff]
        %v324 = vld [vmem:[%s279 + $0x40] sm:$0xff]
        %v325 = vld [vmem:[%s279 + $0x48] sm:$0xff]
        %v326 = vld [vmem:[%s279 + $0x50] sm:$0xff]
        %v327 = vld [vmem:[%s279 + $0x58] sm:$0xff]
        %v328 = vld [vmem:[%s279 + $0x60] sm:$0xff]
        %v329 = vld [vmem:[%s279 + $0x68] sm:$0xff]
        %v330 = vld [vmem:[%s279 + $0x70] sm:$0xff]
        %v331 = vld [vmem:[%s279 + $0x78] sm:$0xff]
        %v332 = vld [vmem:[%s279 + $0x80] sm:$0xff]
        %v333 = vld [vmem:[%s279 + $0x88] sm:$0xff]
        %v334 = vld [vmem:[%s279 + $0x90] sm:$0xff]
        %v335 = vld [vmem:[%s279 + $0x98] sm:$0xff]
        %v336 = vld [vmem:[%s279 + $0xa0] sm:$0xff]
        %v337 = vld [vmem:[%s279 + $0xa8] sm:$0xff]
        %v338 = vld [vmem:[%s279 + $0xb0] sm:$0xff]
        %v339 = vld [vmem:[%s279 + $0xb8] sm:$0xff]
        %v340 = vld [vmem:[%s279 + $0xc0] sm:$0xff]
        %v341 = vld [vmem:[%s279 + $0xc8] sm:$0xff]
        %v342 = vld [vmem:[%s279 + $0xd0] sm:$0xff]
        %v343 = vld [vmem:[%s279 + $0xd8] sm:$0xff]
        %v344 = vld [vmem:[%s279 + $0xe0] sm:$0xff]
        %v345 = vld [vmem:[%s279 + $0xe8] sm:$0xff]
        %v346 = vld [vmem:[%s279 + $0xf0] sm:$0xff]
        %v347 = vld [vmem:[%s279 + $0xf8] sm:$0xff]
        %v348 = vadd.f32 %v316, %v317
        %v349 = vadd.f32 %v348, %v318
        %v350 = vadd.f32 %v349, %v319
        %v351 = vadd.f32 %v350, %v320
        %v352 = vadd.f32 %v351, %v321
        %v353 = vadd.f32 %v352, %v322
        %v354 = vadd.f32 %v353, %v323
        %v355 = vadd.f32 %v354, %v324
        %v356 = vadd.f32 %v355, %v325
        %v357 = vadd.f32 %v356, %v326
        %v358 = vadd.f32 %v357, %v327
        %v359 = vadd.f32 %v358, %v328
        %v360 = vadd.f32 %v359, %v329
        %v361 = vadd.f32 %v360, %v330
        %v362 = vadd.f32 %v361, %v331
        %v363 = vadd.f32 %v362, %v332
        %v364 = vadd.f32 %v363, %v333
        %v365 = vadd.f32 %v364, %v334
        %v366 = vadd.f32 %v365, %v335
        %v367 = vadd.f32 %v366, %v336
        %v368 = vadd.f32 %v367, %v337
        %v369 = vadd.f32 %v368, %v338
        %v370 = vadd.f32 %v369, %v339
        %v371 = vadd.f32 %v370, %v340
        %v372 = vadd.f32 %v371, %v341
        %v373 = vadd.f32 %v372, %v342
        %v374 = vadd.f32 %v373, %v343
        %v375 = vadd.f32 %v374, %v344
        %v376 = vadd.f32 %v375, %v345
        %v377 = vadd.f32 %v376, %v346
        %v378 = vadd.f32 %v377, %v347
        %v379 = vrot.slane %v378, 4
        %v380 = vadd.f32 %v378, %v379
        %v381 = vrot.slane %v380, 2
        %v382 = vadd.f32 %v380, %v381
        %v383 = vrot.slane %v382, 1
        %v384 = vadd.f32 %v382, %v383
        %v385 = vmul.f32 %v384, 0.00390625
        %v386 = vld [vmem:[%s1] sm:$0xff]
        %v387 = vmul.f32 %v385, %v386
        %388 = vadd.xlane.f32.xlu0 %v387
        %v389 = vpop.xlane.xlu0 %388
        %v390 = vld [vmem:[%s2] sm:$0xff]
        %v391 = vadd.f32 %v389, %v390
        %v392 = vmax.f32 %v391, 0.0
        %v393 = vld [vmem:[#allocation6] sm:$0xff]
        %395 = vset.pattern.permute.xlu0 0
        %396 = vperm.xlu0 %395, %v392
        %v397 = vpop.permute.xlu0 %396
        %v399 = vmul.f32 %v397, %v393
        %v400 = vrot.slane %v399, 4
        %v401 = vadd.f32 %v399, %v400
        %v402 = vrot.slane %v401, 2
        %v403 = vadd.f32 %v401, %v402
        %v404 = vrot.slane %v403, 1
        %v405 = vadd.f32 %v403, %v404
        %v406 = vld [vmem:[%s4] sm:$0x1]
        %v407 = vadd.f32 %v405, %v406
        %v408 = vsub.f32 0.0, %v407
        %v409 = vmul.f32 %v408, 1.442695
        %v410 = vpow.pop %v409
        %v411 = vadd.f32 %v410, 1.0
        %v412 = vrcp.pop %v411
        %v413 = vmul.f32 %v411, %v412
        %v414 = vsub.f32 1.0, %v413
        %v415 = vmul.f32 %v412, %v414
        %v416 = vadd.f32 %v412, %v415
        %vm417 = vweird.f32 %v411
        %vm418 = vweird.f32 %v412
        %vm419 = vmor %vm417, %vm418
        %v420 = vsel %vm419, %v412, %v416
        %v421 = vand.u32 2147483647, %v411
        %vm422 = vcmp.eq.f32.partialorder %v421, 8.507059e+37
        %v423 = vand.u32 %v411, 2147483648
        %v424 = vor.u32 1.1754944e-38, %v423
        %v425 = vsel %vm422, %v424, %v420
        %v426 = vmul.f32 1.0, %v425
        %v427 = vld [vmem:[%s5] sm:$0x1]
        %v429 = vperm.slane %v427, 0
        %v431 = vmul.f32 %v316, %v429
        %v432 = vmul.f32 %v317, %v429
        %v433 = vmul.f32 %v318, %v429
        %v434 = vmul.f32 %v319, %v429
        %v435 = vmul.f32 %v320, %v429
        %v436 = vmul.f32 %v321, %v429
        %v437 = vmul.f32 %v322, %v429
        %v438 = vmul.f32 %v323, %v429
        %v439 = vmul.f32 %v324, %v429
        %v440 = vmul.f32 %v325, %v429
        %v441 = vmul.f32 %v326, %v429
        %v442 = vmul.f32 %v327, %v429
        %v443 = vmul.f32 %v328, %v429
        %v444 = vmul.f32 %v329, %v429
        %v445 = vmul.f32 %v330, %v429
        %v446 = vmul.f32 %v331, %v429
        %v447 = vmul.f32 %v332, %v429
        %v448 = vmul.f32 %v333, %v429
        %v449 = vmul.f32 %v334, %v429
        %v450 = vmul.f32 %v335, %v429
        %v451 = vmul.f32 %v336, %v429
        %v452 = vmul.f32 %v337, %v429
        %v453 = vmul.f32 %v338, %v429
        %v454 = vmul.f32 %v339, %v429
        %v455 = vmul.f32 %v340, %v429
        %v456 = vmul.f32 %v341, %v429
        %v457 = vmul.f32 %v342, %v429
        %v458 = vmul.f32 %v343, %v429
        %v459 = vmul.f32 %v344, %v429
        %v460 = vmul.f32 %v345, %v429
        %v461 = vmul.f32 %v346, %v429
        %v462 = vmul.f32 %v347, %v429
        %463 = vadd.xlane.f32.xlu0 %v431
        %v464 = vpop.xlane.xlu0 %463
        %465 = vadd.xlane.f32.xlu0 %v432
        %v466 = vpop.xlane.xlu0 %465
        %467 = vadd.xlane.f32.xlu0 %v433
        %v468 = vpop.xlane.xlu0 %467
        %469 = vadd.xlane.f32.xlu0 %v434
        %v470 = vpop.xlane.xlu0 %469
        %471 = vadd.xlane.f32.xlu0 %v435
        %v472 = vpop.xlane.xlu0 %471
        %473 = vadd.xlane.f32.xlu0 %v436
        %v474 = vpop.xlane.xlu0 %473
        %475 = vadd.xlane.f32.xlu0 %v437
        %v476 = vpop.xlane.xlu0 %475
        %477 = vadd.xlane.f32.xlu0 %v438
        %v478 = vpop.xlane.xlu0 %477
        %479 = vadd.xlane.f32.xlu0 %v439
        %v480 = vpop.xlane.xlu0 %479
        %481 = vadd.xlane.f32.xlu0 %v440
        %v482 = vpop.xlane.xlu0 %481
        %483 = vadd.xlane.f32.xlu0 %v441
        %v484 = vpop.xlane.xlu0 %483
        %485 = vadd.xlane.f32.xlu0 %v442
        %v486 = vpop.xlane.xlu0 %485
        %487 = vadd.xlane.f32.xlu0 %v443
        %v488 = vpop.xlane.xlu0 %487
        %489 = vadd.xlane.f32.xlu0 %v444
        %v490 = vpop.xlane.xlu0 %489
        %491 = vadd.xlane.f32.xlu0 %v445
        %v492 = vpop.xlane.xlu0 %491
        %493 = vadd.xlane.f32.xlu0 %v446
        %v494 = vpop.xlane.xlu0 %493
        %495 = vadd.xlane.f32.xlu0 %v447
        %v496 = vpop.xlane.xlu0 %495
        %497 = vadd.xlane.f32.xlu0 %v448
        %v498 = vpop.xlane.xlu0 %497
        %499 = vadd.xlane.f32.xlu0 %v449
        %v500 = vpop.xlane.xlu0 %499
        %501 = vadd.xlane.f32.xlu0 %v450
        %v502 = vpop.xlane.xlu0 %501
        %503 = vadd.xlane.f32.xlu0 %v451
        %v504 = vpop.xlane.xlu0 %503
        %505 = vadd.xlane.f32.xlu0 %v452
        %v506 = vpop.xlane.xlu0 %505
        %507 = vadd.xlane.f32.xlu0 %v453
        %v508 = vpop.xlane.xlu0 %507
        %509 = vadd.xlane.f32.xlu0 %v454
        %v510 = vpop.xlane.xlu0 %509
        %511 = vadd.xlane.f32.xlu0 %v455
        %v512 = vpop.xlane.xlu0 %511
        %513 = vadd.xlane.f32.xlu0 %v456
        %v514 = vpop.xlane.xlu0 %513
        %515 = vadd.xlane.f32.xlu0 %v457
        %v516 = vpop.xlane.xlu0 %515
        %517 = vadd.xlane.f32.xlu0 %v458
        %v518 = vpop.xlane.xlu0 %517
        %519 = vadd.xlane.f32.xlu0 %v459
        %v520 = vpop.xlane.xlu0 %519
        %521 = vadd.xlane.f32.xlu0 %v460
        %v522 = vpop.xlane.xlu0 %521
        %523 = vadd.xlane.f32.xlu0 %v461
        %v524 = vpop.xlane.xlu0 %523
        %525 = vadd.xlane.f32.xlu0 %v462
        %v526 = vpop.xlane.xlu0 %525
        %v527 = vld [vmem:[#allocation2] sm:$0x1]
        %v529 = vperm.slane %v527, 0
        %v531 = vadd.f32 %v464, %v529
        %v532 = vadd.f32 %v466, %v529
        %v533 = vadd.f32 %v468, %v529
        %v534 = vadd.f32 %v470, %v529
        %v535 = vadd.f32 %v472, %v529
        %v536 = vadd.f32 %v474, %v529
        %v537 = vadd.f32 %v476, %v529
        %v538 = vadd.f32 %v478, %v529
        %v539 = vadd.f32 %v480, %v529
        %v540 = vadd.f32 %v482, %v529
        %v541 = vadd.f32 %v484, %v529
        %v542 = vadd.f32 %v486, %v529
        %v543 = vadd.f32 %v488, %v529
        %v544 = vadd.f32 %v490, %v529
        %v545 = vadd.f32 %v492, %v529
        %v546 = vadd.f32 %v494, %v529
        %v547 = vadd.f32 %v496, %v529
        %v548 = vadd.f32 %v498, %v529
        %v549 = vadd.f32 %v500, %v529
        %v550 = vadd.f32 %v502, %v529
        %v551 = vadd.f32 %v504, %v529
        %v552 = vadd.f32 %v506, %v529
        %v553 = vadd.f32 %v508, %v529
        %v554 = vadd.f32 %v510, %v529
        %v555 = vadd.f32 %v512, %v529
        %v556 = vadd.f32 %v514, %v529
        %v557 = vadd.f32 %v516, %v529
        %v558 = vadd.f32 %v518, %v529
        %v559 = vadd.f32 %v520, %v529
        %v560 = vadd.f32 %v522, %v529
        %v561 = vadd.f32 %v524, %v529
        %v562 = vadd.f32 %v526, %v529
        %v563 = vsub.f32 0.0, %v531
        %v564 = vsub.f32 0.0, %v532
        %v565 = vsub.f32 0.0, %v533
        %v566 = vsub.f32 0.0, %v534
        %v567 = vsub.f32 0.0, %v535
        %v568 = vsub.f32 0.0, %v536
        %v569 = vsub.f32 0.0, %v537
        %v570 = vsub.f32 0.0, %v538
        %v571 = vsub.f32 0.0, %v539
        %v572 = vsub.f32 0.0, %v540
        %v573 = vsub.f32 0.0, %v541
        %v574 = vsub.f32 0.0, %v542
        %v575 = vsub.f32 0.0, %v543
        %v576 = vsub.f32 0.0, %v544
        %v577 = vsub.f32 0.0, %v545
        %v578 = vsub.f32 0.0, %v546
        %v579 = vsub.f32 0.0, %v547
        %v580 = vsub.f32 0.0, %v548
        %v581 = vsub.f32 0.0, %v549
        %v582 = vsub.f32 0.0, %v550
        %v583 = vsub.f32 0.0, %v551
        %v584 = vsub.f32 0.0, %v552
        %v585 = vsub.f32 0.0, %v553
        %v586 = vsub.f32 0.0, %v554
        %v587 = vsub.f32 0.0, %v555
        %v588 = vsub.f32 0.0, %v556
        %v589 = vsub.f32 0.0, %v557
        %v590 = vsub.f32 0.0, %v558
        %v591 = vsub.f32 0.0, %v559
        %v592 = vsub.f32 0.0, %v560
        %v593 = vsub.f32 0.0, %v561
        %v594 = vsub.f32 0.0, %v562
        %v595 = vmul.f32 %v563, 1.442695
        %v596 = vpow.pop %v595
        %v597 = vmul.f32 %v564, 1.442695
        %v598 = vpow.pop %v597
        %v599 = vmul.f32 %v565, 1.442695
        %v600 = vpow.pop %v599
        %v601 = vmul.f32 %v566, 1.442695
        %v602 = vpow.pop %v601
        %v603 = vmul.f32 %v567, 1.442695
        %v604 = vpow.pop %v603
        %v605 = vmul.f32 %v568, 1.442695
        %v606 = vpow.pop %v605
        %v607 = vmul.f32 %v569, 1.442695
        %v608 = vpow.pop %v607
        %v609 = vmul.f32 %v570, 1.442695
        %v610 = vpow.pop %v609
        %v611 = vmul.f32 %v571, 1.442695
        %v612 = vpow.pop %v611
        %v613 = vmul.f32 %v572, 1.442695
        %v614 = vpow.pop %v613
        %v615 = vmul.f32 %v573, 1.442695
        %v616 = vpow.pop %v615
        %v617 = vmul.f32 %v574, 1.442695
        %v618 = vpow.pop %v617
        %v619 = vmul.f32 %v575, 1.442695
        %v620 = vpow.pop %v619
        %v621 = vmul.f32 %v576, 1.442695
        %v622 = vpow.pop %v621
        %v623 = vmul.f32 %v577, 1.442695
        %v624 = vpow.pop %v623
        %v625 = vmul.f32 %v578, 1.442695
        %v626 = vpow.pop %v625
        %v627 = vmul.f32 %v579, 1.442695
        %v628 = vpow.pop %v627
        %v629 = vmul.f32 %v580, 1.442695
        %v630 = vpow.pop %v629
        %v631 = vmul.f32 %v581, 1.442695
        %v632 = vpow.pop %v631
        %v633 = vmul.f32 %v582, 1.442695
        %v634 = vpow.pop %v633
        %v635 = vmul.f32 %v583, 1.442695
        %v636 = vpow.pop %v635
        %v637 = vmul.f32 %v584, 1.442695
        %v638 = vpow.pop %v637
        %v639 = vmul.f32 %v585, 1.442695
        %v640 = vpow.pop %v639
        %v641 = vmul.f32 %v586, 1.442695
        %v642 = vpow.pop %v641
        %v643 = vmul.f32 %v587, 1.442695
        %v644 = vpow.pop %v643
        %v645 = vmul.f32 %v588, 1.442695
        %v646 = vpow.pop %v645
        %v647 = vmul.f32 %v589, 1.442695
        %v648 = vpow.pop %v647
        %v649 = vmul.f32 %v590, 1.442695
        %v650 = vpow.pop %v649
        %v651 = vmul.f32 %v591, 1.442695
        %v652 = vpow.pop %v651
        %v653 = vmul.f32 %v592, 1.442695
        %v654 = vpow.pop %v653
        %v655 = vmul.f32 %v593, 1.442695
        %v656 = vpow.pop %v655
        %v657 = vmul.f32 %v594, 1.442695
        %v658 = vpow.pop %v657
        %v659 = vadd.f32 %v596, 1.0
        %v660 = vadd.f32 %v598, 1.0
        %v661 = vadd.f32 %v600, 1.0
        %v662 = vadd.f32 %v602, 1.0
        %v663 = vadd.f32 %v604, 1.0
        %v664 = vadd.f32 %v606, 1.0
        %v665 = vadd.f32 %v608, 1.0
        %v666 = vadd.f32 %v610, 1.0
        %v667 = vadd.f32 %v612, 1.0
        %v668 = vadd.f32 %v614, 1.0
        %v669 = vadd.f32 %v616, 1.0
        %v670 = vadd.f32 %v618, 1.0
        %v671 = vadd.f32 %v620, 1.0
        %v672 = vadd.f32 %v622, 1.0
        %v673 = vadd.f32 %v624, 1.0
        %v674 = vadd.f32 %v626, 1.0
        %v675 = vadd.f32 %v628, 1.0
        %v676 = vadd.f32 %v630, 1.0
        %v677 = vadd.f32 %v632, 1.0
        %v678 = vadd.f32 %v634, 1.0
        %v679 = vadd.f32 %v636, 1.0
        %v680 = vadd.f32 %v638, 1.0
        %v681 = vadd.f32 %v640, 1.0
        %v682 = vadd.f32 %v642, 1.0
        %v683 = vadd.f32 %v644, 1.0
        %v684 = vadd.f32 %v646, 1.0
        %v685 = vadd.f32 %v648, 1.0
        %v686 = vadd.f32 %v650, 1.0
        %v687 = vadd.f32 %v652, 1.0
        %v688 = vadd.f32 %v654, 1.0
        %v689 = vadd.f32 %v656, 1.0
        %v690 = vadd.f32 %v658, 1.0
        %v691 = vrcp.pop %v659
        %v692 = vmul.f32 %v659, %v691
        %v693 = vsub.f32 1.0, %v692
        %v694 = vmul.f32 %v691, %v693
        %v695 = vadd.f32 %v691, %v694
        %vm696 = vweird.f32 %v659
        %vm697 = vweird.f32 %v691
        %vm698 = vmor %vm696, %vm697
        %v699 = vsel %vm698, %v691, %v695
        %v700 = vand.u32 2147483647, %v659
        %vm701 = vcmp.eq.f32.partialorder %v700, 8.507059e+37
        %v702 = vand.u32 %v659, 2147483648
        %v703 = vor.u32 1.1754944e-38, %v702
        %v704 = vsel %vm701, %v703, %v699
        %v705 = vmul.f32 1.0, %v704
        %v706 = vrcp.pop %v660
        %v707 = vmul.f32 %v660, %v706
        %v708 = vsub.f32 1.0, %v707
        %v709 = vmul.f32 %v706, %v708
        %v710 = vadd.f32 %v706, %v709
        %vm711 = vweird.f32 %v660
        %vm712 = vweird.f32 %v706
        %vm713 = vmor %vm711, %vm712
        %v714 = vsel %vm713, %v706, %v710
        %v715 = vand.u32 2147483647, %v660
        %vm716 = vcmp.eq.f32.partialorder %v715, 8.507059e+37
        %v717 = vand.u32 %v660, 2147483648
        %v718 = vor.u32 1.1754944e-38, %v717
        %v719 = vsel %vm716, %v718, %v714
        %v720 = vmul.f32 1.0, %v719
        %v721 = vrcp.pop %v661
        %v722 = vmul.f32 %v661, %v721
        %v723 = vsub.f32 1.0, %v722
        %v724 = vmul.f32 %v721, %v723
        %v725 = vadd.f32 %v721, %v724
        %vm726 = vweird.f32 %v661
        %vm727 = vweird.f32 %v721
        %vm728 = vmor %vm726, %vm727
        %v729 = vsel %vm728, %v721, %v725
        %v730 = vand.u32 2147483647, %v661
        %vm731 = vcmp.eq.f32.partialorder %v730, 8.507059e+37
        %v732 = vand.u32 %v661, 2147483648
        %v733 = vor.u32 1.1754944e-38, %v732
        %v734 = vsel %vm731, %v733, %v729
        %v735 = vmul.f32 1.0, %v734
        %v736 = vrcp.pop %v662
        %v737 = vmul.f32 %v662, %v736
        %v738 = vsub.f32 1.0, %v737
        %v739 = vmul.f32 %v736, %v738
        %v740 = vadd.f32 %v736, %v739
        %vm741 = vweird.f32 %v662
        %vm742 = vweird.f32 %v736
        %vm743 = vmor %vm741, %vm742
        %v744 = vsel %vm743, %v736, %v740
        %v745 = vand.u32 2147483647, %v662
        %vm746 = vcmp.eq.f32.partialorder %v745, 8.507059e+37
        %v747 = vand.u32 %v662, 2147483648
        %v748 = vor.u32 1.1754944e-38, %v747
        %v749 = vsel %vm746, %v748, %v744
        %v750 = vmul.f32 1.0, %v749
        %v751 = vrcp.pop %v663
        %v752 = vmul.f32 %v663, %v751
        %v753 = vsub.f32 1.0, %v752
        %v754 = vmul.f32 %v751, %v753
        %v755 = vadd.f32 %v751, %v754
        %vm756 = vweird.f32 %v663
        %vm757 = vweird.f32 %v751
        %vm758 = vmor %vm756, %vm757
        %v759 = vsel %vm758, %v751, %v755
        %v760 = vand.u32 2147483647, %v663
        %vm761 = vcmp.eq.f32.partialorder %v760, 8.507059e+37
        %v762 = vand.u32 %v663, 2147483648
        %v763 = vor.u32 1.1754944e-38, %v762
        %v764 = vsel %vm761, %v763, %v759
        %v765 = vmul.f32 1.0, %v764
        %v766 = vrcp.pop %v664
        %v767 = vmul.f32 %v664, %v766
        %v768 = vsub.f32 1.0, %v767
        %v769 = vmul.f32 %v766, %v768
        %v770 = vadd.f32 %v766, %v769
        %vm771 = vweird.f32 %v664
        %vm772 = vweird.f32 %v766
        %vm773 = vmor %vm771, %vm772
        %v774 = vsel %vm773, %v766, %v770
        %v775 = vand.u32 2147483647, %v664
        %vm776 = vcmp.eq.f32.partialorder %v775, 8.507059e+37
        %v777 = vand.u32 %v664, 2147483648
        %v778 = vor.u32 1.1754944e-38, %v777
        %v779 = vsel %vm776, %v778, %v774
        %v780 = vmul.f32 1.0, %v779
        %v781 = vrcp.pop %v665
        %v782 = vmul.f32 %v665, %v781
        %v783 = vsub.f32 1.0, %v782
        %v784 = vmul.f32 %v781, %v783
        %v785 = vadd.f32 %v781, %v784
        %vm786 = vweird.f32 %v665
        %vm787 = vweird.f32 %v781
        %vm788 = vmor %vm786, %vm787
        %v789 = vsel %vm788, %v781, %v785
        %v790 = vand.u32 2147483647, %v665
        %vm791 = vcmp.eq.f32.partialorder %v790, 8.507059e+37
        %v792 = vand.u32 %v665, 2147483648
        %v793 = vor.u32 1.1754944e-38, %v792
        %v794 = vsel %vm791, %v793, %v789
        %v795 = vmul.f32 1.0, %v794
        %v796 = vrcp.pop %v666
        %v797 = vmul.f32 %v666, %v796
        %v798 = vsub.f32 1.0, %v797
        %v799 = vmul.f32 %v796, %v798
        %v800 = vadd.f32 %v796, %v799
        %vm801 = vweird.f32 %v666
        %vm802 = vweird.f32 %v796
        %vm803 = vmor %vm801, %vm802
        %v804 = vsel %vm803, %v796, %v800
        %v805 = vand.u32 2147483647, %v666
        %vm806 = vcmp.eq.f32.partialorder %v805, 8.507059e+37
        %v807 = vand.u32 %v666, 2147483648
        %v808 = vor.u32 1.1754944e-38, %v807
        %v809 = vsel %vm806, %v808, %v804
        %v810 = vmul.f32 1.0, %v809
        %v811 = vrcp.pop %v667
        %v812 = vmul.f32 %v667, %v811
        %v813 = vsub.f32 1.0, %v812
        %v814 = vmul.f32 %v811, %v813
        %v815 = vadd.f32 %v811, %v814
        %vm816 = vweird.f32 %v667
        %vm817 = vweird.f32 %v811
        %vm818 = vmor %vm816, %vm817
        %v819 = vsel %vm818, %v811, %v815
        %v820 = vand.u32 2147483647, %v667
        %vm821 = vcmp.eq.f32.partialorder %v820, 8.507059e+37
        %v822 = vand.u32 %v667, 2147483648
        %v823 = vor.u32 1.1754944e-38, %v822
        %v824 = vsel %vm821, %v823, %v819
        %v825 = vmul.f32 1.0, %v824
        %v826 = vrcp.pop %v668
        %v827 = vmul.f32 %v668, %v826
        %v828 = vsub.f32 1.0, %v827
        %v829 = vmul.f32 %v826, %v828
        %v830 = vadd.f32 %v826, %v829
        %vm831 = vweird.f32 %v668
        %vm832 = vweird.f32 %v826
        %vm833 = vmor %vm831, %vm832
        %v834 = vsel %vm833, %v826, %v830
        %v835 = vand.u32 2147483647, %v668
        %vm836 = vcmp.eq.f32.partialorder %v835, 8.507059e+37
        %v837 = vand.u32 %v668, 2147483648
        %v838 = vor.u32 1.1754944e-38, %v837
        %v839 = vsel %vm836, %v838, %v834
        %v840 = vmul.f32 1.0, %v839
        %v841 = vrcp.pop %v669
        %v842 = vmul.f32 %v669, %v841
        %v843 = vsub.f32 1.0, %v842
        %v844 = vmul.f32 %v841, %v843
        %v845 = vadd.f32 %v841, %v844
        %vm846 = vweird.f32 %v669
        %vm847 = vweird.f32 %v841
        %vm848 = vmor %vm846, %vm847
        %v849 = vsel %vm848, %v841, %v845
        %v850 = vand.u32 2147483647, %v669
        %vm851 = vcmp.eq.f32.partialorder %v850, 8.507059e+37
        %v852 = vand.u32 %v669, 2147483648
        %v853 = vor.u32 1.1754944e-38, %v852
        %v854 = vsel %vm851, %v853, %v849
        %v855 = vmul.f32 1.0, %v854
        %v856 = vrcp.pop %v670
        %v857 = vmul.f32 %v670, %v856
        %v858 = vsub.f32 1.0, %v857
        %v859 = vmul.f32 %v856, %v858
        %v860 = vadd.f32 %v856, %v859
        %vm861 = vweird.f32 %v670
        %vm862 = vweird.f32 %v856
        %vm863 = vmor %vm861, %vm862
        %v864 = vsel %vm863, %v856, %v860
        %v865 = vand.u32 2147483647, %v670
        %vm866 = vcmp.eq.f32.partialorder %v865, 8.507059e+37
        %v867 = vand.u32 %v670, 2147483648
        %v868 = vor.u32 1.1754944e-38, %v867
        %v869 = vsel %vm866, %v868, %v864
        %v870 = vmul.f32 1.0, %v869
        %v871 = vrcp.pop %v671
        %v872 = vmul.f32 %v671, %v871
        %v873 = vsub.f32 1.0, %v872
        %v874 = vmul.f32 %v871, %v873
        %v875 = vadd.f32 %v871, %v874
        %vm876 = vweird.f32 %v671
        %vm877 = vweird.f32 %v871
        %vm878 = vmor %vm876, %vm877
        %v879 = vsel %vm878, %v871, %v875
        %v880 = vand.u32 2147483647, %v671
        %vm881 = vcmp.eq.f32.partialorder %v880, 8.507059e+37
        %v882 = vand.u32 %v671, 2147483648
        %v883 = vor.u32 1.1754944e-38, %v882
        %v884 = vsel %vm881, %v883, %v879
        %v885 = vmul.f32 1.0, %v884
        %v886 = vrcp.pop %v672
        %v887 = vmul.f32 %v672, %v886
        %v888 = vsub.f32 1.0, %v887
        %v889 = vmul.f32 %v886, %v888
        %v890 = vadd.f32 %v886, %v889
        %vm891 = vweird.f32 %v672
        %vm892 = vweird.f32 %v886
        %vm893 = vmor %vm891, %vm892
        %v894 = vsel %vm893, %v886, %v890
        %v895 = vand.u32 2147483647, %v672
        %vm896 = vcmp.eq.f32.partialorder %v895, 8.507059e+37
        %v897 = vand.u32 %v672, 2147483648
        %v898 = vor.u32 1.1754944e-38, %v897
        %v899 = vsel %vm896, %v898, %v894
        %v900 = vmul.f32 1.0, %v899
        %v901 = vrcp.pop %v673
        %v902 = vmul.f32 %v673, %v901
        %v903 = vsub.f32 1.0, %v902
        %v904 = vmul.f32 %v901, %v903
        %v905 = vadd.f32 %v901, %v904
        %vm906 = vweird.f32 %v673
        %vm907 = vweird.f32 %v901
        %vm908 = vmor %vm906, %vm907
        %v909 = vsel %vm908, %v901, %v905
        %v910 = vand.u32 2147483647, %v673
        %vm911 = vcmp.eq.f32.partialorder %v910, 8.507059e+37
        %v912 = vand.u32 %v673, 2147483648
        %v913 = vor.u32 1.1754944e-38, %v912
        %v914 = vsel %vm911, %v913, %v909
        %v915 = vmul.f32 1.0, %v914
        %v916 = vrcp.pop %v674
        %v917 = vmul.f32 %v674, %v916
        %v918 = vsub.f32 1.0, %v917
        %v919 = vmul.f32 %v916, %v918
        %v920 = vadd.f32 %v916, %v919
        %vm921 = vweird.f32 %v674
        %vm922 = vweird.f32 %v916
        %vm923 = vmor %vm921, %vm922
        %v924 = vsel %vm923, %v916, %v920
        %v925 = vand.u32 2147483647, %v674
        %vm926 = vcmp.eq.f32.partialorder %v925, 8.507059e+37
        %v927 = vand.u32 %v674, 2147483648
        %v928 = vor.u32 1.1754944e-38, %v927
        %v929 = vsel %vm926, %v928, %v924
        %v930 = vmul.f32 1.0, %v929
        %v931 = vrcp.pop %v675
        %v932 = vmul.f32 %v675, %v931
        %v933 = vsub.f32 1.0, %v932
        %v934 = vmul.f32 %v931, %v933
        %v935 = vadd.f32 %v931, %v934
        %vm936 = vweird.f32 %v675
        %vm937 = vweird.f32 %v931
        %vm938 = vmor %vm936, %vm937
        %v939 = vsel %vm938, %v931, %v935
        %v940 = vand.u32 2147483647, %v675
        %vm941 = vcmp.eq.f32.partialorder %v940, 8.507059e+37
        %v942 = vand.u32 %v675, 2147483648
        %v943 = vor.u32 1.1754944e-38, %v942
        %v944 = vsel %vm941, %v943, %v939
        %v945 = vmul.f32 1.0, %v944
        %v946 = vrcp.pop %v676
        %v947 = vmul.f32 %v676, %v946
        %v948 = vsub.f32 1.0, %v947
        %v949 = vmul.f32 %v946, %v948
        %v950 = vadd.f32 %v946, %v949
        %vm951 = vweird.f32 %v676
        %vm952 = vweird.f32 %v946
        %vm953 = vmor %vm951, %vm952
        %v954 = vsel %vm953, %v946, %v950
        %v955 = vand.u32 2147483647, %v676
        %vm956 = vcmp.eq.f32.partialorder %v955, 8.507059e+37
        %v957 = vand.u32 %v676, 2147483648
        %v958 = vor.u32 1.1754944e-38, %v957
        %v959 = vsel %vm956, %v958, %v954
        %v960 = vmul.f32 1.0, %v959
        %v961 = vrcp.pop %v677
        %v962 = vmul.f32 %v677, %v961
        %v963 = vsub.f32 1.0, %v962
        %v964 = vmul.f32 %v961, %v963
        %v965 = vadd.f32 %v961, %v964
        %vm966 = vweird.f32 %v677
        %vm967 = vweird.f32 %v961
        %vm968 = vmor %vm966, %vm967
        %v969 = vsel %vm968, %v961, %v965
        %v970 = vand.u32 2147483647, %v677
        %vm971 = vcmp.eq.f32.partialorder %v970, 8.507059e+37
        %v972 = vand.u32 %v677, 2147483648
        %v973 = vor.u32 1.1754944e-38, %v972
        %v974 = vsel %vm971, %v973, %v969
        %v975 = vmul.f32 1.0, %v974
        %v976 = vrcp.pop %v678
        %v977 = vmul.f32 %v678, %v976
        %v978 = vsub.f32 1.0, %v977
        %v979 = vmul.f32 %v976, %v978
        %v980 = vadd.f32 %v976, %v979
        %vm981 = vweird.f32 %v678
        %vm982 = vweird.f32 %v976
        %vm983 = vmor %vm981, %vm982
        %v984 = vsel %vm983, %v976, %v980
        %v985 = vand.u32 2147483647, %v678
        %vm986 = vcmp.eq.f32.partialorder %v985, 8.507059e+37
        %v987 = vand.u32 %v678, 2147483648
        %v988 = vor.u32 1.1754944e-38, %v987
        %v989 = vsel %vm986, %v988, %v984
        %v990 = vmul.f32 1.0, %v989
        %v991 = vrcp.pop %v679
        %v992 = vmul.f32 %v679, %v991
        %v993 = vsub.f32 1.0, %v992
        %v994 = vmul.f32 %v991, %v993
        %v995 = vadd.f32 %v991, %v994
        %vm996 = vweird.f32 %v679
        %vm997 = vweird.f32 %v991
        %vm998 = vmor %vm996, %vm997
        %v999 = vsel %vm998, %v991, %v995
        %v1000 = vand.u32 2147483647, %v679
        %vm1001 = vcmp.eq.f32.partialorder %v1000, 8.507059e+37
        %v1002 = vand.u32 %v679, 2147483648
        %v1003 = vor.u32 1.1754944e-38, %v1002
        %v1004 = vsel %vm1001, %v1003, %v999
        %v1005 = vmul.f32 1.0, %v1004
        %v1006 = vrcp.pop %v680
        %v1007 = vmul.f32 %v680, %v1006
        %v1008 = vsub.f32 1.0, %v1007
        %v1009 = vmul.f32 %v1006, %v1008
        %v1010 = vadd.f32 %v1006, %v1009
        %vm1011 = vweird.f32 %v680
        %vm1012 = vweird.f32 %v1006
        %vm1013 = vmor %vm1011, %vm1012
        %v1014 = vsel %vm1013, %v1006, %v1010
        %v1015 = vand.u32 2147483647, %v680
        %vm1016 = vcmp.eq.f32.partialorder %v1015, 8.507059e+37
        %v1017 = vand.u32 %v680, 2147483648
        %v1018 = vor.u32 1.1754944e-38, %v1017
        %v1019 = vsel %vm1016, %v1018, %v1014
        %v1020 = vmul.f32 1.0, %v1019
        %v1021 = vrcp.pop %v681
        %v1022 = vmul.f32 %v681, %v1021
        %v1023 = vsub.f32 1.0, %v1022
        %v1024 = vmul.f32 %v1021, %v1023
        %v1025 = vadd.f32 %v1021, %v1024
        %vm1026 = vweird.f32 %v681
        %vm1027 = vweird.f32 %v1021
        %vm1028 = vmor %vm1026, %vm1027
        %v1029 = vsel %vm1028, %v1021, %v1025
        %v1030 = vand.u32 2147483647, %v681
        %vm1031 = vcmp.eq.f32.partialorder %v1030, 8.507059e+37
        %v1032 = vand.u32 %v681, 2147483648
        %v1033 = vor.u32 1.1754944e-38, %v1032
        %v1034 = vsel %vm1031, %v1033, %v1029
        %v1035 = vmul.f32 1.0, %v1034
        %v1036 = vrcp.pop %v682
        %v1037 = vmul.f32 %v682, %v1036
        %v1038 = vsub.f32 1.0, %v1037
        %v1039 = vmul.f32 %v1036, %v1038
        %v1040 = vadd.f32 %v1036, %v1039
        %vm1041 = vweird.f32 %v682
        %vm1042 = vweird.f32 %v1036
        %vm1043 = vmor %vm1041, %vm1042
        %v1044 = vsel %vm1043, %v1036, %v1040
        %v1045 = vand.u32 2147483647, %v682
        %vm1046 = vcmp.eq.f32.partialorder %v1045, 8.507059e+37
        %v1047 = vand.u32 %v682, 2147483648
        %v1048 = vor.u32 1.1754944e-38, %v1047
        %v1049 = vsel %vm1046, %v1048, %v1044
        %v1050 = vmul.f32 1.0, %v1049
        %v1051 = vrcp.pop %v683
        %v1052 = vmul.f32 %v683, %v1051
        %v1053 = vsub.f32 1.0, %v1052
        %v1054 = vmul.f32 %v1051, %v1053
        %v1055 = vadd.f32 %v1051, %v1054
        %vm1056 = vweird.f32 %v683
        %vm1057 = vweird.f32 %v1051
        %vm1058 = vmor %vm1056, %vm1057
        %v1059 = vsel %vm1058, %v1051, %v1055
        %v1060 = vand.u32 2147483647, %v683
        %vm1061 = vcmp.eq.f32.partialorder %v1060, 8.507059e+37
        %v1062 = vand.u32 %v683, 2147483648
        %v1063 = vor.u32 1.1754944e-38, %v1062
        %v1064 = vsel %vm1061, %v1063, %v1059
        %v1065 = vmul.f32 1.0, %v1064
        %v1066 = vrcp.pop %v684
        %v1067 = vmul.f32 %v684, %v1066
        %v1068 = vsub.f32 1.0, %v1067
        %v1069 = vmul.f32 %v1066, %v1068
        %v1070 = vadd.f32 %v1066, %v1069
        %vm1071 = vweird.f32 %v684
        %vm1072 = vweird.f32 %v1066
        %vm1073 = vmor %vm1071, %vm1072
        %v1074 = vsel %vm1073, %v1066, %v1070
        %v1075 = vand.u32 2147483647, %v684
        %vm1076 = vcmp.eq.f32.partialorder %v1075, 8.507059e+37
        %v1077 = vand.u32 %v684, 2147483648
        %v1078 = vor.u32 1.1754944e-38, %v1077
        %v1079 = vsel %vm1076, %v1078, %v1074
        %v1080 = vmul.f32 1.0, %v1079
        %v1081 = vrcp.pop %v685
        %v1082 = vmul.f32 %v685, %v1081
        %v1083 = vsub.f32 1.0, %v1082
        %v1084 = vmul.f32 %v1081, %v1083
        %v1085 = vadd.f32 %v1081, %v1084
        %vm1086 = vweird.f32 %v685
        %vm1087 = vweird.f32 %v1081
        %vm1088 = vmor %vm1086, %vm1087
        %v1089 = vsel %vm1088, %v1081, %v1085
        %v1090 = vand.u32 2147483647, %v685
        %vm1091 = vcmp.eq.f32.partialorder %v1090, 8.507059e+37
        %v1092 = vand.u32 %v685, 2147483648
        %v1093 = vor.u32 1.1754944e-38, %v1092
        %v1094 = vsel %vm1091, %v1093, %v1089
        %v1095 = vmul.f32 1.0, %v1094
        %v1096 = vrcp.pop %v686
        %v1097 = vmul.f32 %v686, %v1096
        %v1098 = vsub.f32 1.0, %v1097
        %v1099 = vmul.f32 %v1096, %v1098
        %v1100 = vadd.f32 %v1096, %v1099
        %vm1101 = vweird.f32 %v686
        %vm1102 = vweird.f32 %v1096
        %vm1103 = vmor %vm1101, %vm1102
        %v1104 = vsel %vm1103, %v1096, %v1100
        %v1105 = vand.u32 2147483647, %v686
        %vm1106 = vcmp.eq.f32.partialorder %v1105, 8.507059e+37
        %v1107 = vand.u32 %v686, 2147483648
        %v1108 = vor.u32 1.1754944e-38, %v1107
        %v1109 = vsel %vm1106, %v1108, %v1104
        %v1110 = vmul.f32 1.0, %v1109
        %v1111 = vrcp.pop %v687
        %v1112 = vmul.f32 %v687, %v1111
        %v1113 = vsub.f32 1.0, %v1112
        %v1114 = vmul.f32 %v1111, %v1113
        %v1115 = vadd.f32 %v1111, %v1114
        %vm1116 = vweird.f32 %v687
        %vm1117 = vweird.f32 %v1111
        %vm1118 = vmor %vm1116, %vm1117
        %v1119 = vsel %vm1118, %v1111, %v1115
        %v1120 = vand.u32 2147483647, %v687
        %vm1121 = vcmp.eq.f32.partialorder %v1120, 8.507059e+37
        %v1122 = vand.u32 %v687, 2147483648
        %v1123 = vor.u32 1.1754944e-38, %v1122
        %v1124 = vsel %vm1121, %v1123, %v1119
        %v1125 = vmul.f32 1.0, %v1124
        %v1126 = vrcp.pop %v688
        %v1127 = vmul.f32 %v688, %v1126
        %v1128 = vsub.f32 1.0, %v1127
        %v1129 = vmul.f32 %v1126, %v1128
        %v1130 = vadd.f32 %v1126, %v1129
        %vm1131 = vweird.f32 %v688
        %vm1132 = vweird.f32 %v1126
        %vm1133 = vmor %vm1131, %vm1132
        %v1134 = vsel %vm1133, %v1126, %v1130
        %v1135 = vand.u32 2147483647, %v688
        %vm1136 = vcmp.eq.f32.partialorder %v1135, 8.507059e+37
        %v1137 = vand.u32 %v688, 2147483648
        %v1138 = vor.u32 1.1754944e-38, %v1137
        %v1139 = vsel %vm1136, %v1138, %v1134
        %v1140 = vmul.f32 1.0, %v1139
        %v1141 = vrcp.pop %v689
        %v1142 = vmul.f32 %v689, %v1141
        %v1143 = vsub.f32 1.0, %v1142
        %v1144 = vmul.f32 %v1141, %v1143
        %v1145 = vadd.f32 %v1141, %v1144
        %vm1146 = vweird.f32 %v689
        %vm1147 = vweird.f32 %v1141
        %vm1148 = vmor %vm1146, %vm1147
        %v1149 = vsel %vm1148, %v1141, %v1145
        %v1150 = vand.u32 2147483647, %v689
        %vm1151 = vcmp.eq.f32.partialorder %v1150, 8.507059e+37
        %v1152 = vand.u32 %v689, 2147483648
        %v1153 = vor.u32 1.1754944e-38, %v1152
        %v1154 = vsel %vm1151, %v1153, %v1149
        %v1155 = vmul.f32 1.0, %v1154
        %v1156 = vrcp.pop %v690
        %v1157 = vmul.f32 %v690, %v1156
        %v1158 = vsub.f32 1.0, %v1157
        %v1159 = vmul.f32 %v1156, %v1158
        %v1160 = vadd.f32 %v1156, %v1159
        %vm1161 = vweird.f32 %v690
        %vm1162 = vweird.f32 %v1156
        %vm1163 = vmor %vm1161, %vm1162
        %v1164 = vsel %vm1163, %v1156, %v1160
        %v1165 = vand.u32 2147483647, %v690
        %vm1166 = vcmp.eq.f32.partialorder %v1165, 8.507059e+37
        %v1167 = vand.u32 %v690, 2147483648
        %v1168 = vor.u32 1.1754944e-38, %v1167
        %v1169 = vsel %vm1166, %v1168, %v1164
        %v1170 = vmul.f32 1.0, %v1169
        %v1171 = vperm.slane %v426, 0
        %1173 = vset.pattern.permute.xlu0 0
        %1174 = vperm.xlu0 %1173, %v705
        %v1175 = vpop.permute.xlu0 %1174
        %1178 = vset.pattern.permute.xlu0 0
        %1179 = vperm.xlu0 %1178, %v720
        %v1180 = vpop.permute.xlu0 %1179
        %1183 = vset.pattern.permute.xlu0 0
        %1184 = vperm.xlu0 %1183, %v735
        %v1185 = vpop.permute.xlu0 %1184
        %1188 = vset.pattern.permute.xlu0 0
        %1189 = vperm.xlu0 %1188, %v750
        %v1190 = vpop.permute.xlu0 %1189
        %1193 = vset.pattern.permute.xlu0 0
        %1194 = vperm.xlu0 %1193, %v765
        %v1195 = vpop.permute.xlu0 %1194
        %1198 = vset.pattern.permute.xlu0 0
        %1199 = vperm.xlu0 %1198, %v780
        %v1200 = vpop.permute.xlu0 %1199
        %1203 = vset.pattern.permute.xlu0 0
        %1204 = vperm.xlu0 %1203, %v795
        %v1205 = vpop.permute.xlu0 %1204
        %1208 = vset.pattern.permute.xlu0 0
        %1209 = vperm.xlu0 %1208, %v810
        %v1210 = vpop.permute.xlu0 %1209
        %1213 = vset.pattern.permute.xlu0 0
        %1214 = vperm.xlu0 %1213, %v825
        %v1215 = vpop.permute.xlu0 %1214
        %1218 = vset.pattern.permute.xlu0 0
        %1219 = vperm.xlu0 %1218, %v840
        %v1220 = vpop.permute.xlu0 %1219
        %1223 = vset.pattern.permute.xlu0 0
        %1224 = vperm.xlu0 %1223, %v855
        %v1225 = vpop.permute.xlu0 %1224
        %1228 = vset.pattern.permute.xlu0 0
        %1229 = vperm.xlu0 %1228, %v870
        %v1230 = vpop.permute.xlu0 %1229
        %1233 = vset.pattern.permute.xlu0 0
        %1234 = vperm.xlu0 %1233, %v885
        %v1235 = vpop.permute.xlu0 %1234
        %1238 = vset.pattern.permute.xlu0 0
        %1239 = vperm.xlu0 %1238, %v900
        %v1240 = vpop.permute.xlu0 %1239
        %1243 = vset.pattern.permute.xlu0 0
        %1244 = vperm.xlu0 %1243, %v915
        %v1245 = vpop.permute.xlu0 %1244
        %1248 = vset.pattern.permute.xlu0 0
        %1249 = vperm.xlu0 %1248, %v930
        %v1250 = vpop.permute.xlu0 %1249
        %1253 = vset.pattern.permute.xlu0 0
        %1254 = vperm.xlu0 %1253, %v945
        %v1255 = vpop.permute.xlu0 %1254
        %1258 = vset.pattern.permute.xlu0 0
        %1259 = vperm.xlu0 %1258, %v960
        %v1260 = vpop.permute.xlu0 %1259
        %1263 = vset.pattern.permute.xlu0 0
        %1264 = vperm.xlu0 %1263, %v975
        %v1265 = vpop.permute.xlu0 %1264
        %1268 = vset.pattern.permute.xlu0 0
        %1269 = vperm.xlu0 %1268, %v990
        %v1270 = vpop.permute.xlu0 %1269
        %1273 = vset.pattern.permute.xlu0 0
        %1274 = vperm.xlu0 %1273, %v1005
        %v1275 = vpop.permute.xlu0 %1274
        %1278 = vset.pattern.permute.xlu0 0
        %1279 = vperm.xlu0 %1278, %v1020
        %v1280 = vpop.permute.xlu0 %1279
        %1283 = vset.pattern.permute.xlu0 0
        %1284 = vperm.xlu0 %1283, %v1035
        %v1285 = vpop.permute.xlu0 %1284
        %1288 = vset.pattern.permute.xlu0 0
        %1289 = vperm.xlu0 %1288, %v1050
        %v1290 = vpop.permute.xlu0 %1289
        %1293 = vset.pattern.permute.xlu0 0
        %1294 = vperm.xlu0 %1293, %v1065
        %v1295 = vpop.permute.xlu0 %1294
        %1298 = vset.pattern.permute.xlu0 0
        %1299 = vperm.xlu0 %1298, %v1080
        %v1300 = vpop.permute.xlu0 %1299
        %1303 = vset.pattern.permute.xlu0 0
        %1304 = vperm.xlu0 %1303, %v1095
        %v1305 = vpop.permute.xlu0 %1304
        %1308 = vset.pattern.permute.xlu0 0
        %1309 = vperm.xlu0 %1308, %v1110
        %v1310 = vpop.permute.xlu0 %1309
        %1313 = vset.pattern.permute.xlu0 0
        %1314 = vperm.xlu0 %1313, %v1125
        %v1315 = vpop.permute.xlu0 %1314
        %1318 = vset.pattern.permute.xlu0 0
        %1319 = vperm.xlu0 %1318, %v1140
        %v1320 = vpop.permute.xlu0 %1319
        %1323 = vset.pattern.permute.xlu0 0
        %1324 = vperm.xlu0 %1323, %v1155
        %v1325 = vpop.permute.xlu0 %1324
        %1328 = vset.pattern.permute.xlu0 0
        %1329 = vperm.xlu0 %1328, %v1170
        %v1330 = vpop.permute.xlu0 %1329
        %v1332 = vadd.f32 %v1171, %v1175
        %v1333 = vadd.f32 %v1171, %v1180
        %v1334 = vadd.f32 %v1171, %v1185
        %v1335 = vadd.f32 %v1171, %v1190
        %v1336 = vadd.f32 %v1171, %v1195
        %v1337 = vadd.f32 %v1171, %v1200
        %v1338 = vadd.f32 %v1171, %v1205
        %v1339 = vadd.f32 %v1171, %v1210
        %v1340 = vadd.f32 %v1171, %v1215
        %v1341 = vadd.f32 %v1171, %v1220
        %v1342 = vadd.f32 %v1171, %v1225
        %v1343 = vadd.f32 %v1171, %v1230
        %v1344 = vadd.f32 %v1171, %v1235
        %v1345 = vadd.f32 %v1171, %v1240
        %v1346 = vadd.f32 %v1171, %v1245
        %v1347 = vadd.f32 %v1171, %v1250
        %v1348 = vadd.f32 %v1171, %v1255
        %v1349 = vadd.f32 %v1171, %v1260
        %v1350 = vadd.f32 %v1171, %v1265
        %v1351 = vadd.f32 %v1171, %v1270
        %v1352 = vadd.f32 %v1171, %v1275
        %v1353 = vadd.f32 %v1171, %v1280
        %v1354 = vadd.f32 %v1171, %v1285
        %v1355 = vadd.f32 %v1171, %v1290
        %v1356 = vadd.f32 %v1171, %v1295
        %v1357 = vadd.f32 %v1171, %v1300
        %v1358 = vadd.f32 %v1171, %v1305
        %v1359 = vadd.f32 %v1171, %v1310
        %v1360 = vadd.f32 %v1171, %v1315
        %v1361 = vadd.f32 %v1171, %v1320
        %v1362 = vadd.f32 %v1171, %v1325
        %v1363 = vadd.f32 %v1171, %v1330
        %v1364 = vmul.f32 %v316, %v1332
        %v1365 = vmul.f32 %v317, %v1333
        %v1366 = vmul.f32 %v318, %v1334
        %v1367 = vmul.f32 %v319, %v1335
        %v1368 = vmul.f32 %v320, %v1336
        %v1369 = vmul.f32 %v321, %v1337
        %v1370 = vmul.f32 %v322, %v1338
        %v1371 = vmul.f32 %v323, %v1339
        %v1372 = vmul.f32 %v324, %v1340
        %v1373 = vmul.f32 %v325, %v1341
        %v1374 = vmul.f32 %v326, %v1342
        %v1375 = vmul.f32 %v327, %v1343
        %v1376 = vmul.f32 %v328, %v1344
        %v1377 = vmul.f32 %v329, %v1345
        %v1378 = vmul.f32 %v330, %v1346
        %v1379 = vmul.f32 %v331, %v1347
        %v1380 = vmul.f32 %v332, %v1348
        %v1381 = vmul.f32 %v333, %v1349
        %v1382 = vmul.f32 %v334, %v1350
        %v1383 = vmul.f32 %v335, %v1351
        %v1384 = vmul.f32 %v336, %v1352
        %v1385 = vmul.f32 %v337, %v1353
        %v1386 = vmul.f32 %v338, %v1354
        %v1387 = vmul.f32 %v339, %v1355
        %v1388 = vmul.f32 %v340, %v1356
        %v1389 = vmul.f32 %v341, %v1357
        %v1390 = vmul.f32 %v342, %v1358
        %v1391 = vmul.f32 %v343, %v1359
        %v1392 = vmul.f32 %v344, %v1360
        %v1393 = vmul.f32 %v345, %v1361
        %v1394 = vmul.f32 %v346, %v1362
        %v1395 = vmul.f32 %v347, %v1363
        %1396 = vst [vmem:[%s315] sm:$0xff] %v1364
        %1397 = vst [vmem:[%s315 + $0x8] sm:$0xff] %v1365
        %1398 = vst [vmem:[%s315 + $0x10] sm:$0xff] %v1366
        %1399 = vst [vmem:[%s315 + $0x18] sm:$0xff] %v1367
        %1400 = vst [vmem:[%s315 + $0x20] sm:$0xff] %v1368
        %1401 = vst [vmem:[%s315 + $0x28] sm:$0xff] %v1369
        %1402 = vst [vmem:[%s315 + $0x30] sm:$0xff] %v1370
        %1403 = vst [vmem:[%s315 + $0x38] sm:$0xff] %v1371
        %1404 = vst [vmem:[%s315 + $0x40] sm:$0xff] %v1372
        %1405 = vst [vmem:[%s315 + $0x48] sm:$0xff] %v1373
        %1406 = vst [vmem:[%s315 + $0x50] sm:$0xff] %v1374
        %1407 = vst [vmem:[%s315 + $0x58] sm:$0xff] %v1375
        %1408 = vst [vmem:[%s315 + $0x60] sm:$0xff] %v1376
        %1409 = vst [vmem:[%s315 + $0x68] sm:$0xff] %v1377
        %1410 = vst [vmem:[%s315 + $0x70] sm:$0xff] %v1378
        %1411 = vst [vmem:[%s315 + $0x78] sm:$0xff] %v1379
        %1412 = vst [vmem:[%s315 + $0x80] sm:$0xff] %v1380
        %1413 = vst [vmem:[%s315 + $0x88] sm:$0xff] %v1381
        %1414 = vst [vmem:[%s315 + $0x90] sm:$0xff] %v1382
        %1415 = vst [vmem:[%s315 + $0x98] sm:$0xff] %v1383
        %1416 = vst [vmem:[%s315 + $0xa0] sm:$0xff] %v1384
        %1417 = vst [vmem:[%s315 + $0xa8] sm:$0xff] %v1385
        %1418 = vst [vmem:[%s315 + $0xb0] sm:$0xff] %v1386
        %1419 = vst [vmem:[%s315 + $0xb8] sm:$0xff] %v1387
        %1420 = vst [vmem:[%s315 + $0xc0] sm:$0xff] %v1388
        %1421 = vst [vmem:[%s315 + $0xc8] sm:$0xff] %v1389
        %1422 = vst [vmem:[%s315 + $0xd0] sm:$0xff] %v1390
        %1423 = vst [vmem:[%s315 + $0xd8] sm:$0xff] %v1391
        %1424 = vst [vmem:[%s315 + $0xe0] sm:$0xff] %v1392
        %1425 = vst [vmem:[%s315 + $0xe8] sm:$0xff] %v1393
        %1426 = vst [vmem:[%s315 + $0xf0] sm:$0xff] %v1394
        %1427 = vst [vmem:[%s315 + $0xf8] sm:$0xff] %v1395
        %s1428 = sand.u32 %s187, 1
        %s1429 = scalar_lea.sflag [#allocation5], %s1428
        %s1430 = sand.u32 %s187, 1
        %s1431 = smul.addr %s1430, 256
        %s1432 = scalar_lea.vmem [#allocation8], %s1431
        // Predicated region
        $region57: #{tpu_custom_call.1} parent=47 // pred_check
          %p1433 = pneg %p197
        $region58: #{tpu_custom_call.1} parent=47 // pred_check_branch
          %1435 = sbr.rel (%p1433) target = $region60
        $region59: #{tpu_custom_call.1} parent=47 // pred_region
          %1437 = vsyncadd %s1429, 0
          %s1438 = smul.addr %s27, 32
          %s1439 = smul.addr %s1438, 8
          %s1440 = scalar_lea.hbm %s7, %s1439
          %s1441 = sshll.u32 %s1432, 4
          %s1442 = int_to_ptr.vmem [resolvable:$true] %s1441
          %s1443 = sshll.u32 %s1440, 4
          %s1444 = int_to_ptr.hbm [resolvable:$true] %s1443
          %1449 = dma.vmem_to_hbm [thread:$0]  %s1442, 4096, %s1444, %s1429, 128, 128, 8
        $region60: #{tpu_custom_call.1} parent=47 // pred_fallthru
          _
      $region48: #{tpu_custom_call.1} parent=5 // pred_fallthru
        _
      %p1450 = scmp.le.s32.totalorder 2, %s22
      // Predicated region
      $region61: #{tpu_custom_call.1} parent=5 // pred_check
        %p1451 = pneg %p1450
      $region62: #{tpu_custom_call.1} parent=5 // pred_check_branch
        %1453 = sbr.rel (%p1451) target = $region64
      $region63: #{tpu_custom_call.1} parent=5 // pred_region
        %s1454 = ssub.s32 %s22, 2
        // Predicated region
        $region65: #{tpu_custom_call.1} parent=63 // pred_check
          %p1455 = pneg %p203
        $region66: #{tpu_custom_call.1} parent=63 // pred_check_branch
          %1457 = sbr.rel (%p1455) target = $region68
        $region67: #{tpu_custom_call.1} parent=63 // pred_region
          %s1458 = sand.u32 %s188, 1
          %s1459 = scalar_lea.sflag [#allocation5], %s1458
          %s1460 = sand.u32 %s188, 1
          %s1461 = smul.addr %s1460, 256
          %s1462 = scalar_lea.vmem [#allocation8], %s1461
          %1464 = dma.done %s1459, 4096
        $region68: #{tpu_custom_call.1} parent=63 // pred_fallthru
          _
      $region64: #{tpu_custom_call.1} parent=5 // pred_fallthru
        _
    $region6: #{tpu_custom_call.1} parent=1 // loop_footer
      %s26 = sadd.s32 1, %s22
    $region7: #{tpu_custom_call.1} parent=1 // loop_footer_branch
      %21 = sbr.rel target = $region3
    $region8: #{tpu_custom_call.1} parent=1 // loop_exit
      _
    %1465 = vsyncpa [#allocation4], 1
    %s1466 = scalar_lea.sflag [#allocation4], 1
    %1467 = vsyncpa %s1466, 1
    %1468 = vsyncpa [#allocation7], 1
    %1469 = vsyncpa [#allocation5], 1
    %s1470 = scalar_lea.sflag [#allocation5], 1
    %1471 = vsyncpa %s1470, 1

</llo_original>
